<compile_context>
chip_gen: v7x
topology: tpu7x:2x2x1
jax: 0.10.0
libtpu: 0.0.40
codegen_flags: <defaults>
</compile_context>

<pallas_src>
import jax
import jax.numpy as jnp
from jax.experimental import pallas as pl
from jax.experimental.pallas import tpu as pltpu

LEAK = 0.2        # nn.LeakyReLU(0.2) negative slope
LANE = 128        # TPU lane width == hard-coded hidden size of the module
N_LAYERS = 8      # 4 encoder + 4 decoder linear layers


def _round_up(x, m):
    return ((x + m - 1) // m) * m


def autoencoder_kernel(x_ref, w_ref, b_ref, out_ref, h_scr):
    """One batch tile of the fused 8-layer encoder/decoder chain.

    x_ref   : (tm, A)        f32       narrow input tile (true action width)
    w_ref   : (8, 128, 128)  bf16/f32  packed zero-padded (in,out) weights;
                                       layer 7's output columns sit at lane
                                       offset nh_latent
    b_ref   : (8, 1, 128)    f32       packed zero-padded biases (same offset)
    out_ref : (tm, 128)      f32       packed output: z in lanes [0:nh_latent],
                                       xhat in lanes [nh_latent:nh_latent+A]
    h_scr   : (tm, 128)      f32       VMEM scratch: zero-extended activation
    """
    a = x_ref.shape[-1]
    mm_dtype = w_ref.dtype

    # Zero-extend the narrow input to the 128-lane hidden width in VMEM
    # (lanes [a:128] must be exactly zero for the padded-weight math).
    h_scr[...] = jnp.zeros_like(h_scr)
    h_scr[:, :a] = x_ref[...]
    h = h_scr[...]

    z = None
    for layer in range(N_LAYERS):
        # bf16 (or f32) operands, f32 accumulation on the MXU.
        y = jnp.dot(h.astype(mm_dtype), w_ref[layer],
                    preferred_element_type=jnp.float32)
        y = y + b_ref[layer]                     # (1,128) broadcast, f32 VPU
        if layer == 3:                           # encoder output: no activation
            z = y                                # lanes [nh_latent:] are exactly 0
            h = y                                # decoder consumes the f32 latent
        elif layer == N_LAYERS - 1:              # decoder output: no activation
            # Layer-7 weights were packed at output-lane offset nh_latent, so y
            # holds xhat in lanes [nh_latent:nh_latent+A] and zeros elsewhere;
            # z holds the latent in lanes [0:nh_latent] and zeros elsewhere.
            # One exact add, one full-width unmasked store.
            out_ref[...] = (z + y).astype(out_ref.dtype)
        else:
            h = jnp.where(y > 0, y, LEAK * y)    # LeakyReLU(0.2)


def pack_params(enc_params, dec_params, *, matmul_dtype=jnp.bfloat16,
                last_out_offset=0):
    """Zero-pad every (in,out) weight / (1,out) bias to 128 lanes and stack.

    The final layer's output columns are placed at lane offset
    `last_out_offset` so the kernel can emit z and xhat in one packed slab.
    """
    all_params = list(enc_params) + list(dec_params)
    ws, bs = [], []
    for idx, (w, b) in enumerate(all_params):
        fin, fout = w.shape
        off = last_out_offset if idx == len(all_params) - 1 else 0
        # TODO(synk): dims > 128 would need K/N tiling inside the kernel.
        assert fin <= LANE and off + fout <= LANE
        wp = jnp.zeros((LANE, LANE), jnp.float32).at[:fin, off:off + fout].set(
            w.astype(jnp.float32))
        bp = jnp.zeros((1, LANE), jnp.float32).at[:, off:off + fout].set(
            jnp.reshape(b, (1, fout)).astype(jnp.float32))
        ws.append(wp)
        bs.append(bp)
    w_packed = jnp.stack(ws).astype(matmul_dtype)   # (8, 128, 128)
    b_packed = jnp.stack(bs)                        # (8, 1, 128) f32
    return w_packed, b_packed


def mlp_autoencoder(x, enc_params, dec_params, *, batch_tile=None,
                    matmul_dtype=jnp.bfloat16):
    B, A = x.shape
    hidden = enc_params[0][0].shape[1]
    nh_latent = enc_params[3][0].shape[1]
    assert hidden == LANE, "MLPAutoEncoder hard-codes hidden width 128"
    assert A <= LANE and nh_latent <= LANE
    assert nh_latent + A <= LANE, "packed output needs nh_latent + actions <= 128"

    # ---- batch tiling ------------------------------------------------------
    if batch_tile is None:
        cap = 1024                              # big MXU-friendly tile, VMEM-safe
        n_steps = max(2, pl.cdiv(B, cap))       # >=2 grid steps (2 TCs on v7x)
        if n_steps % 2:
            n_steps += 1                        # keep grid length even when possible
        batch_tile = max(8, min(_round_up(pl.cdiv(B, n_steps), 8), cap))
    assert batch_tile % 8 == 0, "batch_tile must be a multiple of 8"
    tm = batch_tile
    grid_m = pl.cdiv(B, tm)
    B_pad = grid_m * tm

    # ---- narrow input (no 128-lane padding through HBM) --------------------
    x_in = x.astype(jnp.float32)
    if B_pad != B:
        # Only the (< tm) tail rows are padded; rows beyond B are sliced off below.
        x_in = jnp.pad(x_in, ((0, B_pad - B), (0, 0)))

    w_packed, b_packed = pack_params(enc_params, dec_params,
                                     matmul_dtype=matmul_dtype,
                                     last_out_offset=nh_latent)

    out_packed = pl.pallas_call(
        autoencoder_kernel,
        out_shape=jax.ShapeDtypeStruct((B_pad, LANE), jnp.float32),
        grid_spec=pltpu.PrefetchScalarGridSpec(
            num_scalar_prefetch=0,
            grid=(grid_m,),
            in_specs=[
                pl.BlockSpec((tm, A), lambda i: (i, 0)),              # narrow x
                pl.BlockSpec((N_LAYERS, LANE, LANE), lambda i: (0, 0, 0)),  # weights
                pl.BlockSpec((N_LAYERS, 1, LANE), lambda i: (0, 0, 0)),     # biases
            ],
            out_specs=pl.BlockSpec((tm, LANE), lambda i: (i, 0)),     # packed z|xhat
            scratch_shapes=[pltpu.VMEM((tm, LANE), jnp.float32)],
        ),
        compiler_params=pltpu.CompilerParams(
            dimension_semantics=("parallel",)),
    )(x_in, w_packed, b_packed)

    # Split the packed slab into the module's true outputs.
    z = out_packed[:B, :nh_latent].astype(x.dtype)
    xhat = out_packed[:B, nh_latent:nh_latent + A].astype(x.dtype)
    return z, xhat


def init_mlp_params(key, nin, nout, nh):
    """4 Linear layers (nin->nh, nh->nh, nh->nh, nh->nout), PyTorch-style init.

    Weights stored as (in, out) so forward is y = x @ W + b.
    """
    dims = [(nin, nh), (nh, nh), (nh, nh), (nh, nout)]
    params = []
    for (fan_in, fan_out) in dims:
        key, kw, kb = jax.random.split(key, 3)
        bound = 1.0 / jnp.sqrt(float(fan_in))
        w = jax.random.uniform(kw, (fan_in, fan_out), jnp.float32, -bound, bound)
        b = jax.random.uniform(kb, (1, fan_out), jnp.float32, -bound, bound)
        params.append((w, b))
    return key, params


def reference_forward(x, enc_params, dec_params, *, matmul_dtype=jnp.float32):
    """Pure-JAX reference that applies the same operand casting as the kernel."""
    precision = "highest" if matmul_dtype == jnp.float32 else None

    def mlp(h, params):
        for i, (w, b) in enumerate(params):
            y = jnp.dot(h.astype(matmul_dtype), w.astype(matmul_dtype),
                        preferred_element_type=jnp.float32,
                        precision=precision) + b.reshape(1, -1)
            h = jnp.where(y > 0, y, LEAK * y) if i < len(params) - 1 else y
        return h

    z = mlp(x.astype(jnp.float32), enc_params)
    xhat = mlp(z, dec_params)
    return z, xhat


if __name__ == "__main__":
    ACTIONS = 8       # action dim (MLPAutoEncoder input/output width)
    NH_LATENT = 32    # latent code width (constructor arg `nh`)
    HIDDEN = 128      # MLP internal hidden width (hard-coded 128 in the module)
    BATCH = 16

    key = jax.random.PRNGKey(0)
    key, enc_params = init_mlp_params(key, ACTIONS, NH_LATENT, HIDDEN)
    key, dec_params = init_mlp_params(key, NH_LATENT, ACTIONS, HIDDEN)
    key, kx = jax.random.split(key)
    x = jax.random.normal(kx, (BATCH, ACTIONS), jnp.float32)

    # 1) Exact-semantics check: f32 matmul operands vs full-precision reference.
    z32, xhat32 = mlp_autoencoder(x, enc_params, dec_params,
                                  matmul_dtype=jnp.float32)
    jax.block_until_ready((z32, xhat32))
    z_ref32, xhat_ref32 = reference_forward(x, enc_params, dec_params,
                                            matmul_dtype=jnp.float32)
    assert z32.shape == (BATCH, NH_LATENT) and xhat32.shape == (BATCH, ACTIONS)
    assert jnp.allclose(z32, z_ref32, atol=1e-3, rtol=1e-3)
    assert jnp.allclose(xhat32, xhat_ref32, atol=1e-3, rtol=1e-3)

    # 2) Fast path (default): bf16 MXU operands / f32 accumulation, checked
    #    against a reference applying the identical casting.
    z, xhat = mlp_autoencoder(x, enc_params, dec_params)
    jax.block_until_ready((z, xhat))
    z_ref, xhat_ref = reference_forward(x, enc_params, dec_params,
                                        matmul_dtype=jnp.bfloat16)
    assert z.shape == (BATCH, NH_LATENT) and xhat.shape == (BATCH, ACTIONS)
    assert jnp.allclose(z, z_ref, atol=5e-3, rtol=5e-3)
    assert jnp.allclose(xhat, xhat_ref, atol=5e-3, rtol=5e-3)

    # 3) Uneven batch: exercises the row-padding + [:B] slice path.
    xu = x[:13]
    zu, xhatu = mlp_autoencoder(xu, enc_params, dec_params)
    jax.block_until_ready((zu, xhatu))
    zu_ref, xhatu_ref = reference_forward(xu, enc_params, dec_params,
                                          matmul_dtype=jnp.bfloat16)
    assert zu.shape == (13, NH_LATENT) and xhatu.shape == (13, ACTIONS)
    assert jnp.allclose(zu, zu_ref, atol=5e-3, rtol=5e-3)
    assert jnp.allclose(xhatu, xhatu_ref, atol=5e-3, rtol=5e-3)

    print("KERNEL_OK")
</pallas_src>

<mosaic_0001>
module attributes {stable_mosaic.version = 11 : i64} {
  func.func @autoencoder_kernel(%arg0: i32, %arg1: memref<8x8xf32, #tpu.memory_space<vmem>>, %arg2: memref<8x128x128xf32, #tpu.memory_space<vmem>>, %arg3: memref<8x1x128xf32, #tpu.memory_space<vmem>>, %arg4: memref<8x128xf32, #tpu.memory_space<vmem>>, %arg5: memref<8x128xf32, #tpu.memory_space<vmem>>) attributes {dimension_semantics = [#tpu.dimension_semantics<parallel>], iteration_bounds = array<i64: 2>, scalar_prefetch = 0 : i64, scratch_operands = 1 : i64, tpu.core_type = #tpu.core_type<tc>, window_params = [{transform_indices = @transform_0, window_bounds = array<i64: 8, 8>}, {pipeline_mode = #tpu.pipeline_mode<synchronous>, transform_indices = @transform_1, window_bounds = array<i64: 8, 128, 128>}, {pipeline_mode = #tpu.pipeline_mode<synchronous>, transform_indices = @transform_2, window_bounds = array<i64: 8, 1, 128>}, {transform_indices = @transform_3, window_bounds = array<i64: 8, 128>}]} {
    %cst = arith.constant 0.000000e+00 : f32
    %0 = vector.broadcast %cst : f32 to vector<8x128xf32>
    %c0 = arith.constant 0 : index
    %c0_0 = arith.constant 0 : index
    %1 = vector.load %arg5[%c0, %c0_0] : memref<8x128xf32, #tpu.memory_space<vmem>>, vector<8x128xf32>
    tpu.vector_store %arg5[%c0, %c0_0], %0 {strides = array<i32>} : memref<8x128xf32, #tpu.memory_space<vmem>>, vector<8x128xf32>,
    %c0_1 = arith.constant 0 : index
    %c0_2 = arith.constant 0 : index
    %2 = vector.load %arg1[%c0_1, %c0_2] : memref<8x8xf32, #tpu.memory_space<vmem>>, vector<8x8xf32>
    %c0_3 = arith.constant 0 : index
    %c0_4 = arith.constant 0 : index
    %3 = vector.load %arg5[%c0_3, %c0_4] : memref<8x128xf32, #tpu.memory_space<vmem>>, vector<8x8xf32>
    tpu.vector_store %arg5[%c0_3, %c0_4], %2 {strides = array<i32>} : memref<8x128xf32, #tpu.memory_space<vmem>>, vector<8x8xf32>,
    %c0_5 = arith.constant 0 : index
    %c0_6 = arith.constant 0 : index
    %4 = vector.load %arg5[%c0_5, %c0_6] : memref<8x128xf32, #tpu.memory_space<vmem>>, vector<8x128xf32>
    %c0_7 = arith.constant 0 : index
    %c0_8 = arith.constant 0 : index
    %c0_9 = arith.constant 0 : index
    %5 = vector.load %arg2[%c0_7, %c0_8, %c0_9] : memref<8x128x128xf32, #tpu.memory_space<vmem>>, vector<1x128x128xf32>
    %6 = vector.shape_cast %5 : vector<1x128x128xf32> to vector<128x128xf32>
    %cst_10 = arith.constant dense<0.000000e+00> : vector<8x128xf32>
    %7 = tpu.matmul %4, %6, %cst_10 {dimension_numbers = #tpu.dot_dimension_numbers<[1], [0], [0], [1], [0, 0, 1, 1], [], []>} : vector<8x128xf32>, vector<128x128xf32>, vector<8x128xf32> -> vector<8x128xf32>
    %c0_11 = arith.constant 0 : index
    %c0_12 = arith.constant 0 : index
    %c0_13 = arith.constant 0 : index
    %8 = vector.load %arg3[%c0_11, %c0_12, %c0_13] : memref<8x1x128xf32, #tpu.memory_space<vmem>>, vector<1x1x128xf32>
    %9 = vector.shape_cast %8 : vector<1x1x128xf32> to vector<1x128xf32>
    %10 = vector.broadcast %9 : vector<1x128xf32> to vector<8x128xf32>
    %11 = arith.addf %7, %10 : vector<8x128xf32>
    %cst_14 = arith.constant 0.000000e+00 : f32
    %12 = vector.broadcast %cst_14 : f32 to vector<8x128xf32>
    %13 = arith.cmpf ogt, %11, %12 : vector<8x128xf32>
    %cst_15 = arith.constant 2.000000e-01 : f32
    %14 = vector.broadcast %cst_15 : f32 to vector<8x128xf32>
    %15 = arith.mulf %14, %11 : vector<8x128xf32>
    %16 = arith.select %13, %11, %15 : vector<8x128xi1>, vector<8x128xf32>
    %c1 = arith.constant 1 : index
    %c0_16 = arith.constant 0 : index
    %c0_17 = arith.constant 0 : index
    %17 = vector.load %arg2[%c1, %c0_16, %c0_17] : memref<8x128x128xf32, #tpu.memory_space<vmem>>, vector<1x128x128xf32>
    %18 = vector.shape_cast %17 : vector<1x128x128xf32> to vector<128x128xf32>
    %cst_18 = arith.constant dense<0.000000e+00> : vector<8x128xf32>
    %19 = tpu.matmul %16, %18, %cst_18 {dimension_numbers = #tpu.dot_dimension_numbers<[1], [0], [0], [1], [0, 0, 1, 1], [], []>} : vector<8x128xf32>, vector<128x128xf32>, vector<8x128xf32> -> vector<8x128xf32>
    %c1_19 = arith.constant 1 : index
    %c0_20 = arith.constant 0 : index
    %c0_21 = arith.constant 0 : index
    %20 = vector.load %arg3[%c1_19, %c0_20, %c0_21] : memref<8x1x128xf32, #tpu.memory_space<vmem>>, vector<1x1x128xf32>
    %21 = vector.shape_cast %20 : vector<1x1x128xf32> to vector<1x128xf32>
    %22 = vector.broadcast %21 : vector<1x128xf32> to vector<8x128xf32>
    %23 = arith.addf %19, %22 : vector<8x128xf32>
    %cst_22 = arith.constant 0.000000e+00 : f32
    %24 = vector.broadcast %cst_22 : f32 to vector<8x128xf32>
    %25 = arith.cmpf ogt, %23, %24 : vector<8x128xf32>
    %cst_23 = arith.constant 2.000000e-01 : f32
    %26 = vector.broadcast %cst_23 : f32 to vector<8x128xf32>
    %27 = arith.mulf %26, %23 : vector<8x128xf32>
    %28 = arith.select %25, %23, %27 : vector<8x128xi1>, vector<8x128xf32>
    %c2 = arith.constant 2 : index
    %c0_24 = arith.constant 0 : index
    %c0_25 = arith.constant 0 : index
    %29 = vector.load %arg2[%c2, %c0_24, %c0_25] : memref<8x128x128xf32, #tpu.memory_space<vmem>>, vector<1x128x128xf32>
    %30 = vector.shape_cast %29 : vector<1x128x128xf32> to vector<128x128xf32>
    %cst_26 = arith.constant dense<0.000000e+00> : vector<8x128xf32>
    %31 = tpu.matmul %28, %30, %cst_26 {dimension_numbers = #tpu.dot_dimension_numbers<[1], [0], [0], [1], [0, 0, 1, 1], [], []>} : vector<8x128xf32>, vector<128x128xf32>, vector<8x128xf32> -> vector<8x128xf32>
    %c2_27 = arith.constant 2 : index
    %c0_28 = arith.constant 0 : index
    %c0_29 = arith.constant 0 : index
    %32 = vector.load %arg3[%c2_27, %c0_28, %c0_29] : memref<8x1x128xf32, #tpu.memory_space<vmem>>, vector<1x1x128xf32>
    %33 = vector.shape_cast %32 : vector<1x1x128xf32> to vector<1x128xf32>
    %34 = vector.broadcast %33 : vector<1x128xf32> to vector<8x128xf32>
    %35 = arith.addf %31, %34 : vector<8x128xf32>
    %cst_30 = arith.constant 0.000000e+00 : f32
    %36 = vector.broadcast %cst_30 : f32 to vector<8x128xf32>
    %37 = arith.cmpf ogt, %35, %36 : vector<8x128xf32>
    %cst_31 = arith.constant 2.000000e-01 : f32
    %38 = vector.broadcast %cst_31 : f32 to vector<8x128xf32>
    %39 = arith.mulf %38, %35 : vector<8x128xf32>
    %40 = arith.select %37, %35, %39 : vector<8x128xi1>, vector<8x128xf32>
    %c3 = arith.constant 3 : index
    %c0_32 = arith.constant 0 : index
    %c0_33 = arith.constant 0 : index
    %41 = vector.load %arg2[%c3, %c0_32, %c0_33] : memref<8x128x128xf32, #tpu.memory_space<vmem>>, vector<1x128x128xf32>
    %42 = vector.shape_cast %41 : vector<1x128x128xf32> to vector<128x128xf32>
    %cst_34 = arith.constant dense<0.000000e+00> : vector<8x128xf32>
    %43 = tpu.matmul %40, %42, %cst_34 {dimension_numbers = #tpu.dot_dimension_numbers<[1], [0], [0], [1], [0, 0, 1, 1], [], []>} : vector<8x128xf32>, vector<128x128xf32>, vector<8x128xf32> -> vector<8x128xf32>
    %c3_35 = arith.constant 3 : index
    %c0_36 = arith.constant 0 : index
    %c0_37 = arith.constant 0 : index
    %44 = vector.load %arg3[%c3_35, %c0_36, %c0_37] : memref<8x1x128xf32, #tpu.memory_space<vmem>>, vector<1x1x128xf32>
    %45 = vector.shape_cast %44 : vector<1x1x128xf32> to vector<1x128xf32>
    %46 = vector.broadcast %45 : vector<1x128xf32> to vector<8x128xf32>
    %47 = arith.addf %43, %46 : vector<8x128xf32>
    %c4 = arith.constant 4 : index
    %c0_38 = arith.constant 0 : index
    %c0_39 = arith.constant 0 : index
    %48 = vector.load %arg2[%c4, %c0_38, %c0_39] : memref<8x128x128xf32, #tpu.memory_space<vmem>>, vector<1x128x128xf32>
    %49 = vector.shape_cast %48 : vector<1x128x128xf32> to vector<128x128xf32>
    %cst_40 = arith.constant dense<0.000000e+00> : vector<8x128xf32>
    %50 = tpu.matmul %47, %49, %cst_40 {dimension_numbers = #tpu.dot_dimension_numbers<[1], [0], [0], [1], [0, 0, 1, 1], [], []>} : vector<8x128xf32>, vector<128x128xf32>, vector<8x128xf32> -> vector<8x128xf32>
    %c4_41 = arith.constant 4 : index
    %c0_42 = arith.constant 0 : index
    %c0_43 = arith.constant 0 : index
    %51 = vector.load %arg3[%c4_41, %c0_42, %c0_43] : memref<8x1x128xf32, #tpu.memory_space<vmem>>, vector<1x1x128xf32>
    %52 = vector.shape_cast %51 : vector<1x1x128xf32> to vector<1x128xf32>
    %53 = vector.broadcast %52 : vector<1x128xf32> to vector<8x128xf32>
    %54 = arith.addf %50, %53 : vector<8x128xf32>
    %cst_44 = arith.constant 0.000000e+00 : f32
    %55 = vector.broadcast %cst_44 : f32 to vector<8x128xf32>
    %56 = arith.cmpf ogt, %54, %55 : vector<8x128xf32>
    %cst_45 = arith.constant 2.000000e-01 : f32
    %57 = vector.broadcast %cst_45 : f32 to vector<8x128xf32>
    %58 = arith.mulf %57, %54 : vector<8x128xf32>
    %59 = arith.select %56, %54, %58 : vector<8x128xi1>, vector<8x128xf32>
    %c5 = arith.constant 5 : index
    %c0_46 = arith.constant 0 : index
    %c0_47 = arith.constant 0 : index
    %60 = vector.load %arg2[%c5, %c0_46, %c0_47] : memref<8x128x128xf32, #tpu.memory_space<vmem>>, vector<1x128x128xf32>
    %61 = vector.shape_cast %60 : vector<1x128x128xf32> to vector<128x128xf32>
    %cst_48 = arith.constant dense<0.000000e+00> : vector<8x128xf32>
    %62 = tpu.matmul %59, %61, %cst_48 {dimension_numbers = #tpu.dot_dimension_numbers<[1], [0], [0], [1], [0, 0, 1, 1], [], []>} : vector<8x128xf32>, vector<128x128xf32>, vector<8x128xf32> -> vector<8x128xf32>
    %c5_49 = arith.constant 5 : index
    %c0_50 = arith.constant 0 : index
    %c0_51 = arith.constant 0 : index
    %63 = vector.load %arg3[%c5_49, %c0_50, %c0_51] : memref<8x1x128xf32, #tpu.memory_space<vmem>>, vector<1x1x128xf32>
    %64 = vector.shape_cast %63 : vector<1x1x128xf32> to vector<1x128xf32>
    %65 = vector.broadcast %64 : vector<1x128xf32> to vector<8x128xf32>
    %66 = arith.addf %62, %65 : vector<8x128xf32>
    %cst_52 = arith.constant 0.000000e+00 : f32
    %67 = vector.broadcast %cst_52 : f32 to vector<8x128xf32>
    %68 = arith.cmpf ogt, %66, %67 : vector<8x128xf32>
    %cst_53 = arith.constant 2.000000e-01 : f32
    %69 = vector.broadcast %cst_53 : f32 to vector<8x128xf32>
    %70 = arith.mulf %69, %66 : vector<8x128xf32>
    %71 = arith.select %68, %66, %70 : vector<8x128xi1>, vector<8x128xf32>
    %c6 = arith.constant 6 : index
    %c0_54 = arith.constant 0 : index
    %c0_55 = arith.constant 0 : index
    %72 = vector.load %arg2[%c6, %c0_54, %c0_55] : memref<8x128x128xf32, #tpu.memory_space<vmem>>, vector<1x128x128xf32>
    %73 = vector.shape_cast %72 : vector<1x128x128xf32> to vector<128x128xf32>
    %cst_56 = arith.constant dense<0.000000e+00> : vector<8x128xf32>
    %74 = tpu.matmul %71, %73, %cst_56 {dimension_numbers = #tpu.dot_dimension_numbers<[1], [0], [0], [1], [0, 0, 1, 1], [], []>} : vector<8x128xf32>, vector<128x128xf32>, vector<8x128xf32> -> vector<8x128xf32>
    %c6_57 = arith.constant 6 : index
    %c0_58 = arith.constant 0 : index
    %c0_59 = arith.constant 0 : index
    %75 = vector.load %arg3[%c6_57, %c0_58, %c0_59] : memref<8x1x128xf32, #tpu.memory_space<vmem>>, vector<1x1x128xf32>
    %76 = vector.shape_cast %75 : vector<1x1x128xf32> to vector<1x128xf32>
    %77 = vector.broadcast %76 : vector<1x128xf32> to vector<8x128xf32>
    %78 = arith.addf %74, %77 : vector<8x128xf32>
    %cst_60 = arith.constant 0.000000e+00 : f32
    %79 = vector.broadcast %cst_60 : f32 to vector<8x128xf32>
    %80 = arith.cmpf ogt, %78, %79 : vector<8x128xf32>
    %cst_61 = arith.constant 2.000000e-01 : f32
    %81 = vector.broadcast %cst_61 : f32 to vector<8x128xf32>
    %82 = arith.mulf %81, %78 : vector<8x128xf32>
    %83 = arith.select %80, %78, %82 : vector<8x128xi1>, vector<8x128xf32>
    %c7 = arith.constant 7 : index
    %c0_62 = arith.constant 0 : index
    %c0_63 = arith.constant 0 : index
    %84 = vector.load %arg2[%c7, %c0_62, %c0_63] : memref<8x128x128xf32, #tpu.memory_space<vmem>>, vector<1x128x128xf32>
    %85 = vector.shape_cast %84 : vector<1x128x128xf32> to vector<128x128xf32>
    %cst_64 = arith.constant dense<0.000000e+00> : vector<8x128xf32>
    %86 = tpu.matmul %83, %85, %cst_64 {dimension_numbers = #tpu.dot_dimension_numbers<[1], [0], [0], [1], [0, 0, 1, 1], [], []>} : vector<8x128xf32>, vector<128x128xf32>, vector<8x128xf32> -> vector<8x128xf32>
    %c7_65 = arith.constant 7 : index
    %c0_66 = arith.constant 0 : index
    %c0_67 = arith.constant 0 : index
    %87 = vector.load %arg3[%c7_65, %c0_66, %c0_67] : memref<8x1x128xf32, #tpu.memory_space<vmem>>, vector<1x1x128xf32>
    %88 = vector.shape_cast %87 : vector<1x1x128xf32> to vector<1x128xf32>
    %89 = vector.broadcast %88 : vector<1x128xf32> to vector<8x128xf32>
    %90 = arith.addf %86, %89 : vector<8x128xf32>
    %91 = arith.addf %47, %90 : vector<8x128xf32>
    %c0_68 = arith.constant 0 : index
    %c0_69 = arith.constant 0 : index
    %92 = vector.load %arg4[%c0_68, %c0_69] : memref<8x128xf32, #tpu.memory_space<vmem>>, vector<8x128xf32>
    tpu.vector_store %arg4[%c0_68, %c0_69], %91 {strides = array<i32>} : memref<8x128xf32, #tpu.memory_space<vmem>>, vector<8x128xf32>,
    return
  }
  func.func @transform_0(%arg0: i32) -> (i32, i32) {
    %c0_i32 = arith.constant 0 : i32
    %c0_i32_0 = arith.constant 0 : i32
    return %arg0, %c0_i32 : i32, i32
  }
  func.func @transform_1(%arg0: i32) -> (i32, i32, i32) {
    %c0_i32 = arith.constant 0 : i32
    %c0_i32_0 = arith.constant 0 : i32
    %c0_i32_1 = arith.constant 0 : i32
    %c0_i32_2 = arith.constant 0 : i32
    return %c0_i32, %c0_i32_0, %c0_i32_1 : i32, i32, i32
  }
  func.func @transform_2(%arg0: i32) -> (i32, i32, i32) {
    %c0_i32 = arith.constant 0 : i32
    %c0_i32_0 = arith.constant 0 : i32
    %c0_i32_1 = arith.constant 0 : i32
    %c0_i32_2 = arith.constant 0 : i32
    return %c0_i32, %c0_i32_0, %c0_i32_1 : i32, i32, i32
  }
  func.func @transform_3(%arg0: i32) -> (i32, i32) {
    %c0_i32 = arith.constant 0 : i32
    %c0_i32_0 = arith.constant 0 : i32
    return %arg0, %c0_i32 : i32, i32
  }
}

</mosaic_0001>

<llo_original>
// kernel: tpu_custom_call.1
$region0: #{tpu_custom_call.1}
  #allocation0 [shape = 'u32[]', space=smem, size = 0x4, offset = 0x4, fixed_abs, tag = 'smem constant byte address 0x4 - core index']
  #allocation1 [shape = 'u32[144,128]{1,0:T(1,128)}', space=vmem, size = 0x12000, scoped, tag = 'internal scratch']
  #allocation2 [shape = 'f32[8,128]{1,0:T(8,128)}', space=vmem, size = 0x1000, scoped, tag = 'scratch operand']
  %s0 = inlined_call_operand.vmem [shape: f32[16,8], index: 0, kind: input, shape index: {}]
  %s1 = inlined_call_operand.hbm [shape: f32[8,128,128], index: 1, kind: input, shape index: {}]
  %s2 = inlined_call_operand.vmem [shape: f32[8,1,128], index: 2, kind: input, shape index: {}]
  %s3 = inlined_call_operand.hbm [shape: f32[16,128], index: 3, kind: output, shape index: {}]
  %s4 = sld [smem:[#allocation0]]
  $region49: #{tpu_custom_call.1} parent=0
    _
  %s6 = ssub.s32 1, %s4
  %s7 = scalar_select 0, %s6, %s4
  $region1: #{tpu_custom_call.1} parent=0
    #allocation3 [shape = 'u8[524288]{0}', space=vmem, size = 0x80000, scoped, tag = 'input window, operand 1, single buffered']
    #allocation4 [shape = 's32[2]{0}', space=sflag, size = 0x8, scoped, tag = 'scoped memory for tpu_custom_call.1']
    #allocation5 [shape = 's32[2]{0}', space=sflag, size = 0x8, scoped, tag = 'scoped memory for tpu_custom_call.1']
    #allocation6 [shape = 'u8[8192]{0}', space=vmem, size = 0x2000, scoped, tag = 'output window, operand 0']
    %8 = vsyncpa [#allocation4], 0
    %9 = vsyncpa [#allocation5], 0
    %s10 = scalar_lea.sflag [#allocation5], 1
    %11 = vsyncpa %s10, 0
    loop: start=0, step=1, limit=4
    $region2: #{tpu_custom_call.1} parent=1 // loop_pre_header
      _
    $region3: #{tpu_custom_call.1} parent=1 // loop_header
      %s13 = sphi 0, %s17
      %p14 = scmp.ge.s32.totalorder %s13, 4
      %s23 = sphi 0, %s25
      %s26 = sphi 0, %s23
      %s27 = sphi 0, %s26
      %s43 = sphi 0, %s27
      %s47 = sphi 0, %s47
      %s49 = sphi 0, %s47
      %s50 = sphi 0, %s49
      %s64 = sphi 0, %s50
      %s68 = sphi 0, %s68
      %s70 = sphi 0, %s68
      %s71 = sphi 0, %s70
      %s85 = sphi 0, %s71
      %s91 = sphi 0, %s93
      %s94 = sphi 0, %s91
      %s95 = sphi 0, %s94
      %s111 = sphi 0, %s95
    $region4: #{tpu_custom_call.1} parent=1 // loop_header_branch
      %16 = sbr.rel (%p14) target = $region8
    $region5: #{tpu_custom_call.1} parent=1 // loop_body
      %s18 = ssub.s32 %s13, 1
      %s19 = ssub.s32 %s13, 2
      %s20 = sadd.s32 %s13, 1
      %s21 = ssub.s32 %s13, %s20
      %p22 = scmp.eq.s32.totalorder %s21, 0
      %s24 = sadd.s32 %s23, 1
      %s25 = scalar_select %p22, %s23, %s24
      %p28 = pneg %p22
      %p29 = scmp.eq.s32.totalorder %s13, 1
      %p30 = por %p28, %p29
      %p31 = scmp.ne.s32.totalorder %s23, %s26
      %p32 = scmp.eq.s32.totalorder %s13, 0
      %p33 = por %p31, %p32
      %p34 = scmp.ne.s32.totalorder %s23, %s26
      %p35 = scmp.eq.s32.totalorder %s18, 1
      %p36 = por %p34, %p35
      %p37 = scmp.ne.s32.totalorder %s26, %s27
      %p38 = scmp.eq.s32.totalorder %s18, 0
      %p39 = por %p37, %p38
      %p40 = scmp.ne.s32.totalorder %s26, %s27
      %p41 = scmp.eq.s32.totalorder %s19, 1
      %p42 = por %p40, %p41
      %p44 = scmp.ne.s32.totalorder %s27, %s43
      %p45 = scmp.eq.s32.totalorder %s19, 0
      %p46 = por %p44, %p45
      %s48 = sadd.s32 %s47, 1
      %p51 = scmp.eq.s32.totalorder %s13, 1
      %p52 = scmp.ne.s32.totalorder %s47, %s49
      %p53 = scmp.eq.s32.totalorder %s13, 0
      %p54 = por %p52, %p53
      %p55 = scmp.ne.s32.totalorder %s47, %s49
      %p56 = scmp.eq.s32.totalorder %s18, 1
      %p57 = por %p55, %p56
      %p58 = scmp.ne.s32.totalorder %s49, %s50
      %p59 = scmp.eq.s32.totalorder %s18, 0
      %p60 = por %p58, %p59
      %p61 = scmp.ne.s32.totalorder %s49, %s50
      %p62 = scmp.eq.s32.totalorder %s19, 1
      %p63 = por %p61, %p62
      %p65 = scmp.ne.s32.totalorder %s50, %s64
      %p66 = scmp.eq.s32.totalorder %s19, 0
      %p67 = por %p65, %p66
      %s69 = sadd.s32 %s68, 1
      %p72 = scmp.eq.s32.totalorder %s13, 1
      %p73 = scmp.ne.s32.totalorder %s68, %s70
      %p74 = scmp.eq.s32.totalorder %s13, 0
      %p75 = por %p73, %p74
      %p76 = scmp.ne.s32.totalorder %s68, %s70
      %p77 = scmp.eq.s32.totalorder %s18, 1
      %p78 = por %p76, %p77
      %p79 = scmp.ne.s32.totalorder %s70, %s71
      %p80 = scmp.eq.s32.totalorder %s18, 0
      %p81 = por %p79, %p80
      %p82 = scmp.ne.s32.totalorder %s70, %s71
      %p83 = scmp.eq.s32.totalorder %s19, 1
      %p84 = por %p82, %p83
      %p86 = scmp.ne.s32.totalorder %s71, %s85
      %p87 = scmp.eq.s32.totalorder %s19, 0
      %p88 = por %p86, %p87
      %s89 = ssub.s32 %s13, %s20
      %p90 = scmp.eq.s32.totalorder %s89, 0
      %s92 = sadd.s32 %s91, 1
      %s93 = scalar_select %p90, %s91, %s92
      %p96 = pneg %p90
      %p97 = scmp.eq.s32.totalorder %s13, 1
      %p98 = por %p96, %p97
      %p99 = scmp.ne.s32.totalorder %s91, %s94
      %p100 = scmp.eq.s32.totalorder %s13, 0
      %p101 = por %p99, %p100
      %p102 = scmp.ne.s32.totalorder %s91, %s94
      %p103 = scmp.eq.s32.totalorder %s18, 1
      %p104 = por %p102, %p103
      %p105 = scmp.ne.s32.totalorder %s94, %s95
      %p106 = scmp.eq.s32.totalorder %s18, 0
      %p107 = por %p105, %p106
      %p108 = scmp.ne.s32.totalorder %s94, %s95
      %p109 = scmp.eq.s32.totalorder %s19, 1
      %p110 = por %p108, %p109
      %p112 = scmp.ne.s32.totalorder %s95, %s111
      %p113 = scmp.eq.s32.totalorder %s19, 0
      %p114 = por %p112, %p113
      %p115 = scmp.le.s32.totalorder 1, %s13
      %p116 = scmp.lt.s32.totalorder %s13, 3
      %p117 = pnand %p115, %p116
      %p118 = pneg %p117
      // Predicated region
      $region9: #{tpu_custom_call.1} parent=5 // pred_check
        _
      $region10: #{tpu_custom_call.1} parent=5 // pred_check_branch
        %120 = sbr.rel (%p117) target = $region12
      $region11: #{tpu_custom_call.1} parent=5 // pred_region
        %s121 = ssub.s32 %s13, 1
        // Predicated region
        $region13: #{tpu_custom_call.1} parent=11 // pred_check
          %p122 = pneg %p60
        $region14: #{tpu_custom_call.1} parent=11 // pred_check_branch
          %124 = sbr.rel (%p122) target = $region16
        $region15: #{tpu_custom_call.1} parent=11 // pred_region
          %s126 = ssub.s32 16384, 16384
          %127 = vsyncadd [#allocation4], %s126
          %s128 = sshll.u32 [#allocation3], 4
          %s129 = int_to_ptr.vmem [resolvable:$true] %s128
          %134 = dma.hbm_to_vmem [thread:$0]  %s1, 16384, %s129, [#allocation4], 128, 128, 8
        $region16: #{tpu_custom_call.1} parent=11 // pred_fallthru
          _
        // Predicated region
        $region17: #{tpu_custom_call.1} parent=11 // pred_check
          %p135 = pneg %p81
        $region18: #{tpu_custom_call.1} parent=11 // pred_check_branch
          %137 = sbr.rel (%p135) target = $region20
        $region19: #{tpu_custom_call.1} parent=11 // pred_region
          _
        $region20: #{tpu_custom_call.1} parent=11 // pred_fallthru
          _
      $region12: #{tpu_custom_call.1} parent=5 // pred_fallthru
        _
      %p138 = scmp.lt.s32.totalorder %s13, 2
      // Predicated region
      $region21: #{tpu_custom_call.1} parent=5 // pred_check
        %p139 = pneg %p138
      $region22: #{tpu_custom_call.1} parent=5 // pred_check_branch
        %141 = sbr.rel (%p139) target = $region24
      $region23: #{tpu_custom_call.1} parent=5 // pred_region
        // Predicated region
        $region25: #{tpu_custom_call.1} parent=23 // pred_check
          %p142 = pneg %p33
        $region26: #{tpu_custom_call.1} parent=23 // pred_check_branch
          %144 = sbr.rel (%p142) target = $region28
        $region27: #{tpu_custom_call.1} parent=23 // pred_region
          %p145 = scmp.lt.s32.totalorder %s13, 1
          %s146 = scalar_select %p145, %s13, 1
          %s147 = smul.addr %s146, 8
          %s148 = scalar_lea.vmem %s0, %s147
        $region28: #{tpu_custom_call.1} parent=23 // pred_fallthru
          _
      $region24: #{tpu_custom_call.1} parent=5 // pred_fallthru
        _
      %p149 = scmp.le.s32.totalorder 1, %s13
      %p150 = scmp.lt.s32.totalorder %s13, 3
      %p151 = pnand %p149, %p150
      %p152 = pneg %p151
      // Predicated region
      $region29: #{tpu_custom_call.1} parent=5 // pred_check
        _
      $region30: #{tpu_custom_call.1} parent=5 // pred_check_branch
        %154 = sbr.rel (%p151) target = $region32
      $region31: #{tpu_custom_call.1} parent=5 // pred_region
        %s155 = ssub.s32 %s13, 1
        // Predicated region
        $region33: #{tpu_custom_call.1} parent=31 // pred_check
          %p156 = pneg %p60
        $region34: #{tpu_custom_call.1} parent=31 // pred_check_branch
          %158 = sbr.rel (%p156) target = $region36
        $region35: #{tpu_custom_call.1} parent=31 // pred_region
          %159 = dma.done [#allocation4], 16384
        $region36: #{tpu_custom_call.1} parent=31 // pred_fallthru
          _
        %p160 = scmp.lt.s32.totalorder %s18, 1
        %s161 = scalar_select %p160, %s18, 1
        %s162 = smul.addr %s161, 8
        %s163 = scalar_lea.vmem %s0, %s162
        %p164 = pneg %p39
        %p165 = pneg %p36
        %p166 = pneg %p60
        %p167 = pneg %p57
        %p168 = pneg %p81
        %p169 = pneg %p78
        %p170 = pneg %p107
        %p171 = pneg %p104
        %s172 = sand.u32 %s94, 1
        %s173 = scalar_lea.sflag [#allocation5], %s172
        %s174 = sand.u32 %s94, 1
        %s175 = smul.addr %s174, 8
        %s176 = scalar_lea.vmem [#allocation6], %s175
        %p177 = scmp.lt.s32.totalorder %s18, 1
        %s178 = scalar_select %p177, %s18, 1
        %s179 = smul.addr %s178, 8
        %s180 = scalar_lea.vmem %s0, %s179
        %181 = vst [vmem:[#allocation2] sm:$0xff] 0.0
        %v182 = vld [vmem:[%s180] sm:$0xff]
        %vm183 = vcmask 64512
        %184 = vst.msk [vmem:[#allocation2] sm:$0xff] %vm183, %v182
        %v185 = vld [vmem:[#allocation2] sm:$0xff]
        %v186 = vld [vmem:[#allocation3] sm:$0xff]
        %v187 = vld [vmem:[#allocation3 + $0x8] sm:$0xff]
        %v188 = vld [vmem:[#allocation3 + $0x10] sm:$0xff]
        %v189 = vld [vmem:[#allocation3 + $0x18] sm:$0xff]
        %v190 = vld [vmem:[#allocation3 + $0x20] sm:$0xff]
        %v191 = vld [vmem:[#allocation3 + $0x28] sm:$0xff]
        %v192 = vld [vmem:[#allocation3 + $0x30] sm:$0xff]
        %v193 = vld [vmem:[#allocation3 + $0x38] sm:$0xff]
        %v194 = vld [vmem:[#allocation3 + $0x40] sm:$0xff]
        %v195 = vld [vmem:[#allocation3 + $0x48] sm:$0xff]
        %v196 = vld [vmem:[#allocation3 + $0x50] sm:$0xff]
        %v197 = vld [vmem:[#allocation3 + $0x58] sm:$0xff]
        %v198 = vld [vmem:[#allocation3 + $0x60] sm:$0xff]
        %v199 = vld [vmem:[#allocation3 + $0x68] sm:$0xff]
        %v200 = vld [vmem:[#allocation3 + $0x70] sm:$0xff]
        %v201 = vld [vmem:[#allocation3 + $0x78] sm:$0xff]
        %v202 = vld [vmem:[%s2] sm:$0x1]
        %v204 = vlaneseq
        %v205 = vshrl.u32 %v204, 7
        %v206 = vsub.s32 0, %v205
        %v207 = vrot.slane %v202, %v206
        %209 = vmatprep.subr.mxu0 0.0
        %210 = vmatpush1.msra.mxu0 %v186
        %211 = vmatprep.subr.mxu0 0.0
        %212 = vmatpush1.msra.mxu0 %v187
        %213 = vmatprep.subr.mxu0 0.0
        %214 = vmatpush1.msra.mxu0 %v188
        %215 = vmatprep.subr.mxu0 0.0
        %216 = vmatpush1.msra.mxu0 %v189
        %217 = vmatprep.subr.mxu0 0.0
        %218 = vmatpush1.msra.mxu0 %v190
        %219 = vmatprep.subr.mxu0 0.0
        %220 = vmatpush1.msra.mxu0 %v191
        %221 = vmatprep.subr.mxu0 0.0
        %222 = vmatpush1.msra.mxu0 %v192
        %223 = vmatprep.subr.mxu0 0.0
        %224 = vmatpush1.msra.mxu0 %v193
        %225 = vmatprep.subr.mxu0 0.0
        %226 = vmatpush1.msra.mxu0 %v194
        %227 = vmatprep.subr.mxu0 0.0
        %228 = vmatpush1.msra.mxu0 %v195
        %229 = vmatprep.subr.mxu0 0.0
        %230 = vmatpush1.msra.mxu0 %v196
        %231 = vmatprep.subr.mxu0 0.0
        %232 = vmatpush1.msra.mxu0 %v197
        %233 = vmatprep.subr.mxu0 0.0
        %234 = vmatpush1.msra.mxu0 %v198
        %235 = vmatprep.subr.mxu0 0.0
        %236 = vmatpush1.msra.mxu0 %v199
        %237 = vmatprep.subr.mxu0 0.0
        %238 = vmatpush1.msra.mxu0 %v200
        %239 = vmatprep.subr.mxu0 0.0
        %240 = vmatpush1.msra.mxu0 %v201
        %241 = vmatprep.subr.mxu0 0.0
        %242 = vmatpush1.msra.mxu0 0.0
        %243 = vmatprep.subr.mxu0 0.0
        %244 = vmatpush1.msra.mxu0 0.0
        %245 = vmatprep.subr.mxu0 0.0
        %246 = vmatpush1.msra.mxu0 0.0
        %247 = vmatprep.subr.mxu0 0.0
        %248 = vmatpush1.msra.mxu0 0.0
        %249 = vmatprep.subr.mxu0 0.0
        %250 = vmatpush1.msra.mxu0 0.0
        %251 = vmatprep.subr.mxu0 0.0
        %252 = vmatpush1.msra.mxu0 0.0
        %253 = vmatprep.subr.mxu0 0.0
        %254 = vmatpush1.msra.mxu0 0.0
        %255 = vmatprep.subr.mxu0 0.0
        %256 = vmatpush1.msra.mxu0 0.0
        %257 = vmatprep.subr.mxu0 0.0
        %258 = vmatpush1.msra.mxu0 0.0
        %259 = vmatprep.subr.mxu0 0.0
        %260 = vmatpush1.msra.mxu0 0.0
        %261 = vmatprep.subr.mxu0 0.0
        %262 = vmatpush1.msra.mxu0 0.0
        %263 = vmatprep.subr.mxu0 0.0
        %264 = vmatpush1.msra.mxu0 0.0
        %265 = vmatprep.subr.mxu0 0.0
        %266 = vmatpush1.msra.mxu0 0.0
        %267 = vmatprep.subr.mxu0 0.0
        %268 = vmatpush1.msra.mxu0 0.0
        %269 = vmatprep.subr.mxu0 0.0
        %270 = vmatpush1.msra.mxu0 0.0
        %271 = vmatprep.subr.mxu0 0.0
        %272 = vmatpush1.msra.mxu0 0.0
        %273 = vmatprep.mubr.f32.mxu0 0.0
        %274 = vmatmul.mubr.f32.gmra.mrb[0].mxu0 %v185
        %v275 = vpop.f32.mrb[0].mxu0
        %v276 = vadd.f32 %v207, %v275
        %v277 = vpop.f32.mrb[0].mxu0
        %278 = vdwg.mxu0
        %vm279 = vcmp.gt.f32.partialorder %v276, 0.0
        %v280 = vmul.f32 %v276, 0.2
        %v281 = vsel %vm279, %v276, %v280
        %s282 = scalar_lea.vmem [#allocation3], 128
        %v283 = vld [vmem:[%s282] sm:$0xff]
        %v284 = vld [vmem:[%s282 + $0x8] sm:$0xff]
        %v285 = vld [vmem:[%s282 + $0x10] sm:$0xff]
        %v286 = vld [vmem:[%s282 + $0x18] sm:$0xff]
        %v287 = vld [vmem:[%s282 + $0x20] sm:$0xff]
        %v288 = vld [vmem:[%s282 + $0x28] sm:$0xff]
        %v289 = vld [vmem:[%s282 + $0x30] sm:$0xff]
        %v290 = vld [vmem:[%s282 + $0x38] sm:$0xff]
        %v291 = vld [vmem:[%s282 + $0x40] sm:$0xff]
        %v292 = vld [vmem:[%s282 + $0x48] sm:$0xff]
        %v293 = vld [vmem:[%s282 + $0x50] sm:$0xff]
        %v294 = vld [vmem:[%s282 + $0x58] sm:$0xff]
        %v295 = vld [vmem:[%s282 + $0x60] sm:$0xff]
        %v296 = vld [vmem:[%s282 + $0x68] sm:$0xff]
        %v297 = vld [vmem:[%s282 + $0x70] sm:$0xff]
        %v298 = vld [vmem:[%s282 + $0x78] sm:$0xff]
        %s299 = scalar_lea.vmem %s2, 1
        %v300 = vld [vmem:[%s299] sm:$0x1]
        %v302 = vlaneseq
        %v303 = vshrl.u32 %v302, 7
        %v304 = vsub.s32 0, %v303
        %v305 = vrot.slane %v300, %v304
        %307 = vmatprep.subr.mxu0 0.0
        %308 = vmatpush1.msra.mxu0 %v283
        %309 = vmatprep.subr.mxu0 0.0
        %310 = vmatpush1.msra.mxu0 %v284
        %311 = vmatprep.subr.mxu0 0.0
        %312 = vmatpush1.msra.mxu0 %v285
        %313 = vmatprep.subr.mxu0 0.0
        %314 = vmatpush1.msra.mxu0 %v286
        %315 = vmatprep.subr.mxu0 0.0
        %316 = vmatpush1.msra.mxu0 %v287
        %317 = vmatprep.subr.mxu0 0.0
        %318 = vmatpush1.msra.mxu0 %v288
        %319 = vmatprep.subr.mxu0 0.0
        %320 = vmatpush1.msra.mxu0 %v289
        %321 = vmatprep.subr.mxu0 0.0
        %322 = vmatpush1.msra.mxu0 %v290
        %323 = vmatprep.subr.mxu0 0.0
        %324 = vmatpush1.msra.mxu0 %v291
        %325 = vmatprep.subr.mxu0 0.0
        %326 = vmatpush1.msra.mxu0 %v292
        %327 = vmatprep.subr.mxu0 0.0
        %328 = vmatpush1.msra.mxu0 %v293
        %329 = vmatprep.subr.mxu0 0.0
        %330 = vmatpush1.msra.mxu0 %v294
        %331 = vmatprep.subr.mxu0 0.0
        %332 = vmatpush1.msra.mxu0 %v295
        %333 = vmatprep.subr.mxu0 0.0
        %334 = vmatpush1.msra.mxu0 %v296
        %335 = vmatprep.subr.mxu0 0.0
        %336 = vmatpush1.msra.mxu0 %v297
        %337 = vmatprep.subr.mxu0 0.0
        %338 = vmatpush1.msra.mxu0 %v298
        %339 = vmatprep.subr.mxu0 0.0
        %340 = vmatpush1.msra.mxu0 0.0
        %341 = vmatprep.subr.mxu0 0.0
        %342 = vmatpush1.msra.mxu0 0.0
        %343 = vmatprep.subr.mxu0 0.0
        %344 = vmatpush1.msra.mxu0 0.0
        %345 = vmatprep.subr.mxu0 0.0
        %346 = vmatpush1.msra.mxu0 0.0
        %347 = vmatprep.subr.mxu0 0.0
        %348 = vmatpush1.msra.mxu0 0.0
        %349 = vmatprep.subr.mxu0 0.0
        %350 = vmatpush1.msra.mxu0 0.0
        %351 = vmatprep.subr.mxu0 0.0
        %352 = vmatpush1.msra.mxu0 0.0
        %353 = vmatprep.subr.mxu0 0.0
        %354 = vmatpush1.msra.mxu0 0.0
        %355 = vmatprep.subr.mxu0 0.0
        %356 = vmatpush1.msra.mxu0 0.0
        %357 = vmatprep.subr.mxu0 0.0
        %358 = vmatpush1.msra.mxu0 0.0
        %359 = vmatprep.subr.mxu0 0.0
        %360 = vmatpush1.msra.mxu0 0.0
        %361 = vmatprep.subr.mxu0 0.0
        %362 = vmatpush1.msra.mxu0 0.0
        %363 = vmatprep.subr.mxu0 0.0
        %364 = vmatpush1.msra.mxu0 0.0
        %365 = vmatprep.subr.mxu0 0.0
        %366 = vmatpush1.msra.mxu0 0.0
        %367 = vmatprep.subr.mxu0 0.0
        %368 = vmatpush1.msra.mxu0 0.0
        %369 = vmatprep.subr.mxu0 0.0
        %370 = vmatpush1.msra.mxu0 0.0
        %371 = vmatprep.mubr.f32.mxu0 0.0
        %372 = vmatmul.mubr.f32.gmra.mrb[0].mxu0 %v281
        %v373 = vpop.f32.mrb[0].mxu0
        %v374 = vadd.f32 %v305, %v373
        %v375 = vpop.f32.mrb[0].mxu0
        %376 = vdwg.mxu0
        %vm377 = vcmp.gt.f32.partialorder %v374, 0.0
        %v378 = vmul.f32 %v374, 0.2
        %v379 = vsel %vm377, %v374, %v378
        %s380 = scalar_lea.vmem [#allocation3], 256
        %v381 = vld [vmem:[%s380] sm:$0xff]
        %v382 = vld [vmem:[%s380 + $0x8] sm:$0xff]
        %v383 = vld [vmem:[%s380 + $0x10] sm:$0xff]
        %v384 = vld [vmem:[%s380 + $0x18] sm:$0xff]
        %v385 = vld [vmem:[%s380 + $0x20] sm:$0xff]
        %v386 = vld [vmem:[%s380 + $0x28] sm:$0xff]
        %v387 = vld [vmem:[%s380 + $0x30] sm:$0xff]
        %v388 = vld [vmem:[%s380 + $0x38] sm:$0xff]
        %v389 = vld [vmem:[%s380 + $0x40] sm:$0xff]
        %v390 = vld [vmem:[%s380 + $0x48] sm:$0xff]
        %v391 = vld [vmem:[%s380 + $0x50] sm:$0xff]
        %v392 = vld [vmem:[%s380 + $0x58] sm:$0xff]
        %v393 = vld [vmem:[%s380 + $0x60] sm:$0xff]
        %v394 = vld [vmem:[%s380 + $0x68] sm:$0xff]
        %v395 = vld [vmem:[%s380 + $0x70] sm:$0xff]
        %v396 = vld [vmem:[%s380 + $0x78] sm:$0xff]
        %s397 = scalar_lea.vmem %s2, 2
        %v398 = vld [vmem:[%s397] sm:$0x1]
        %v400 = vlaneseq
        %v401 = vshrl.u32 %v400, 7
        %v402 = vsub.s32 0, %v401
        %v403 = vrot.slane %v398, %v402
        %405 = vmatprep.subr.mxu0 0.0
        %406 = vmatpush1.msra.mxu0 %v381
        %407 = vmatprep.subr.mxu0 0.0
        %408 = vmatpush1.msra.mxu0 %v382
        %409 = vmatprep.subr.mxu0 0.0
        %410 = vmatpush1.msra.mxu0 %v383
        %411 = vmatprep.subr.mxu0 0.0
        %412 = vmatpush1.msra.mxu0 %v384
        %413 = vmatprep.subr.mxu0 0.0
        %414 = vmatpush1.msra.mxu0 %v385
        %415 = vmatprep.subr.mxu0 0.0
        %416 = vmatpush1.msra.mxu0 %v386
        %417 = vmatprep.subr.mxu0 0.0
        %418 = vmatpush1.msra.mxu0 %v387
        %419 = vmatprep.subr.mxu0 0.0
        %420 = vmatpush1.msra.mxu0 %v388
        %421 = vmatprep.subr.mxu0 0.0
        %422 = vmatpush1.msra.mxu0 %v389
        %423 = vmatprep.subr.mxu0 0.0
        %424 = vmatpush1.msra.mxu0 %v390
        %425 = vmatprep.subr.mxu0 0.0
        %426 = vmatpush1.msra.mxu0 %v391
        %427 = vmatprep.subr.mxu0 0.0
        %428 = vmatpush1.msra.mxu0 %v392
        %429 = vmatprep.subr.mxu0 0.0
        %430 = vmatpush1.msra.mxu0 %v393
        %431 = vmatprep.subr.mxu0 0.0
        %432 = vmatpush1.msra.mxu0 %v394
        %433 = vmatprep.subr.mxu0 0.0
        %434 = vmatpush1.msra.mxu0 %v395
        %435 = vmatprep.subr.mxu0 0.0
        %436 = vmatpush1.msra.mxu0 %v396
        %437 = vmatprep.subr.mxu0 0.0
        %438 = vmatpush1.msra.mxu0 0.0
        %439 = vmatprep.subr.mxu0 0.0
        %440 = vmatpush1.msra.mxu0 0.0
        %441 = vmatprep.subr.mxu0 0.0
        %442 = vmatpush1.msra.mxu0 0.0
        %443 = vmatprep.subr.mxu0 0.0
        %444 = vmatpush1.msra.mxu0 0.0
        %445 = vmatprep.subr.mxu0 0.0
        %446 = vmatpush1.msra.mxu0 0.0
        %447 = vmatprep.subr.mxu0 0.0
        %448 = vmatpush1.msra.mxu0 0.0
        %449 = vmatprep.subr.mxu0 0.0
        %450 = vmatpush1.msra.mxu0 0.0
        %451 = vmatprep.subr.mxu0 0.0
        %452 = vmatpush1.msra.mxu0 0.0
        %453 = vmatprep.subr.mxu0 0.0
        %454 = vmatpush1.msra.mxu0 0.0
        %455 = vmatprep.subr.mxu0 0.0
        %456 = vmatpush1.msra.mxu0 0.0
        %457 = vmatprep.subr.mxu0 0.0
        %458 = vmatpush1.msra.mxu0 0.0
        %459 = vmatprep.subr.mxu0 0.0
        %460 = vmatpush1.msra.mxu0 0.0
        %461 = vmatprep.subr.mxu0 0.0
        %462 = vmatpush1.msra.mxu0 0.0
        %463 = vmatprep.subr.mxu0 0.0
        %464 = vmatpush1.msra.mxu0 0.0
        %465 = vmatprep.subr.mxu0 0.0
        %466 = vmatpush1.msra.mxu0 0.0
        %467 = vmatprep.subr.mxu0 0.0
        %468 = vmatpush1.msra.mxu0 0.0
        %469 = vmatprep.mubr.f32.mxu0 0.0
        %470 = vmatmul.mubr.f32.gmra.mrb[0].mxu0 %v379
        %v471 = vpop.f32.mrb[0].mxu0
        %v472 = vadd.f32 %v403, %v471
        %v473 = vpop.f32.mrb[0].mxu0
        %474 = vdwg.mxu0
        %vm475 = vcmp.gt.f32.partialorder %v472, 0.0
        %v476 = vmul.f32 %v472, 0.2
        %v477 = vsel %vm475, %v472, %v476
        %s478 = scalar_lea.vmem [#allocation3], 384
        %v479 = vld [vmem:[%s478] sm:$0xff]
        %v480 = vld [vmem:[%s478 + $0x8] sm:$0xff]
        %v481 = vld [vmem:[%s478 + $0x10] sm:$0xff]
        %v482 = vld [vmem:[%s478 + $0x18] sm:$0xff]
        %v483 = vld [vmem:[%s478 + $0x20] sm:$0xff]
        %v484 = vld [vmem:[%s478 + $0x28] sm:$0xff]
        %v485 = vld [vmem:[%s478 + $0x30] sm:$0xff]
        %v486 = vld [vmem:[%s478 + $0x38] sm:$0xff]
        %v487 = vld [vmem:[%s478 + $0x40] sm:$0xff]
        %v488 = vld [vmem:[%s478 + $0x48] sm:$0xff]
        %v489 = vld [vmem:[%s478 + $0x50] sm:$0xff]
        %v490 = vld [vmem:[%s478 + $0x58] sm:$0xff]
        %v491 = vld [vmem:[%s478 + $0x60] sm:$0xff]
        %v492 = vld [vmem:[%s478 + $0x68] sm:$0xff]
        %v493 = vld [vmem:[%s478 + $0x70] sm:$0xff]
        %v494 = vld [vmem:[%s478 + $0x78] sm:$0xff]
        %s495 = scalar_lea.vmem %s2, 3
        %v496 = vld [vmem:[%s495] sm:$0x1]
        %v498 = vlaneseq
        %v499 = vshrl.u32 %v498, 7
        %v500 = vsub.s32 0, %v499
        %v501 = vrot.slane %v496, %v500
        %503 = vmatprep.subr.mxu0 0.0
        %504 = vmatpush1.msra.mxu0 %v479
        %505 = vmatprep.subr.mxu0 0.0
        %506 = vmatpush1.msra.mxu0 %v480
        %507 = vmatprep.subr.mxu0 0.0
        %508 = vmatpush1.msra.mxu0 %v481
        %509 = vmatprep.subr.mxu0 0.0
        %510 = vmatpush1.msra.mxu0 %v482
        %511 = vmatprep.subr.mxu0 0.0
        %512 = vmatpush1.msra.mxu0 %v483
        %513 = vmatprep.subr.mxu0 0.0
        %514 = vmatpush1.msra.mxu0 %v484
        %515 = vmatprep.subr.mxu0 0.0
        %516 = vmatpush1.msra.mxu0 %v485
        %517 = vmatprep.subr.mxu0 0.0
        %518 = vmatpush1.msra.mxu0 %v486
        %519 = vmatprep.subr.mxu0 0.0
        %520 = vmatpush1.msra.mxu0 %v487
        %521 = vmatprep.subr.mxu0 0.0
        %522 = vmatpush1.msra.mxu0 %v488
        %523 = vmatprep.subr.mxu0 0.0
        %524 = vmatpush1.msra.mxu0 %v489
        %525 = vmatprep.subr.mxu0 0.0
        %526 = vmatpush1.msra.mxu0 %v490
        %527 = vmatprep.subr.mxu0 0.0
        %528 = vmatpush1.msra.mxu0 %v491
        %529 = vmatprep.subr.mxu0 0.0
        %530 = vmatpush1.msra.mxu0 %v492
        %531 = vmatprep.subr.mxu0 0.0
        %532 = vmatpush1.msra.mxu0 %v493
        %533 = vmatprep.subr.mxu0 0.0
        %534 = vmatpush1.msra.mxu0 %v494
        %535 = vmatprep.subr.mxu0 0.0
        %536 = vmatpush1.msra.mxu0 0.0
        %537 = vmatprep.subr.mxu0 0.0
        %538 = vmatpush1.msra.mxu0 0.0
        %539 = vmatprep.subr.mxu0 0.0
        %540 = vmatpush1.msra.mxu0 0.0
        %541 = vmatprep.subr.mxu0 0.0
        %542 = vmatpush1.msra.mxu0 0.0
        %543 = vmatprep.subr.mxu0 0.0
        %544 = vmatpush1.msra.mxu0 0.0
        %545 = vmatprep.subr.mxu0 0.0
        %546 = vmatpush1.msra.mxu0 0.0
        %547 = vmatprep.subr.mxu0 0.0
        %548 = vmatpush1.msra.mxu0 0.0
        %549 = vmatprep.subr.mxu0 0.0
        %550 = vmatpush1.msra.mxu0 0.0
        %551 = vmatprep.subr.mxu0 0.0
        %552 = vmatpush1.msra.mxu0 0.0
        %553 = vmatprep.subr.mxu0 0.0
        %554 = vmatpush1.msra.mxu0 0.0
        %555 = vmatprep.subr.mxu0 0.0
        %556 = vmatpush1.msra.mxu0 0.0
        %557 = vmatprep.subr.mxu0 0.0
        %558 = vmatpush1.msra.mxu0 0.0
        %559 = vmatprep.subr.mxu0 0.0
        %560 = vmatpush1.msra.mxu0 0.0
        %561 = vmatprep.subr.mxu0 0.0
        %562 = vmatpush1.msra.mxu0 0.0
        %563 = vmatprep.subr.mxu0 0.0
        %564 = vmatpush1.msra.mxu0 0.0
        %565 = vmatprep.subr.mxu0 0.0
        %566 = vmatpush1.msra.mxu0 0.0
        %567 = vmatprep.mubr.f32.mxu0 0.0
        %568 = vmatmul.mubr.f32.gmra.mrb[0].mxu0 %v477
        %v569 = vpop.f32.mrb[0].mxu0
        %v570 = vadd.f32 %v501, %v569
        %v571 = vpop.f32.mrb[0].mxu0
        %572 = vdwg.mxu0
        %s573 = scalar_lea.vmem [#allocation3], 512
        %v574 = vld [vmem:[%s573] sm:$0xff]
        %v575 = vld [vmem:[%s573 + $0x8] sm:$0xff]
        %v576 = vld [vmem:[%s573 + $0x10] sm:$0xff]
        %v577 = vld [vmem:[%s573 + $0x18] sm:$0xff]
        %v578 = vld [vmem:[%s573 + $0x20] sm:$0xff]
        %v579 = vld [vmem:[%s573 + $0x28] sm:$0xff]
        %v580 = vld [vmem:[%s573 + $0x30] sm:$0xff]
        %v581 = vld [vmem:[%s573 + $0x38] sm:$0xff]
        %v582 = vld [vmem:[%s573 + $0x40] sm:$0xff]
        %v583 = vld [vmem:[%s573 + $0x48] sm:$0xff]
        %v584 = vld [vmem:[%s573 + $0x50] sm:$0xff]
        %v585 = vld [vmem:[%s573 + $0x58] sm:$0xff]
        %v586 = vld [vmem:[%s573 + $0x60] sm:$0xff]
        %v587 = vld [vmem:[%s573 + $0x68] sm:$0xff]
        %v588 = vld [vmem:[%s573 + $0x70] sm:$0xff]
        %v589 = vld [vmem:[%s573 + $0x78] sm:$0xff]
        %s590 = scalar_lea.vmem %s2, 4
        %v591 = vld [vmem:[%s590] sm:$0x1]
        %v593 = vlaneseq
        %v594 = vshrl.u32 %v593, 7
        %v595 = vsub.s32 0, %v594
        %v596 = vrot.slane %v591, %v595
        %598 = vmatprep.subr.mxu0 0.0
        %599 = vmatpush1.msra.mxu0 %v574
        %600 = vmatprep.subr.mxu0 0.0
        %601 = vmatpush1.msra.mxu0 %v575
        %602 = vmatprep.subr.mxu0 0.0
        %603 = vmatpush1.msra.mxu0 %v576
        %604 = vmatprep.subr.mxu0 0.0
        %605 = vmatpush1.msra.mxu0 %v577
        %606 = vmatprep.subr.mxu0 0.0
        %607 = vmatpush1.msra.mxu0 %v578
        %608 = vmatprep.subr.mxu0 0.0
        %609 = vmatpush1.msra.mxu0 %v579
        %610 = vmatprep.subr.mxu0 0.0
        %611 = vmatpush1.msra.mxu0 %v580
        %612 = vmatprep.subr.mxu0 0.0
        %613 = vmatpush1.msra.mxu0 %v581
        %614 = vmatprep.subr.mxu0 0.0
        %615 = vmatpush1.msra.mxu0 %v582
        %616 = vmatprep.subr.mxu0 0.0
        %617 = vmatpush1.msra.mxu0 %v583
        %618 = vmatprep.subr.mxu0 0.0
        %619 = vmatpush1.msra.mxu0 %v584
        %620 = vmatprep.subr.mxu0 0.0
        %621 = vmatpush1.msra.mxu0 %v585
        %622 = vmatprep.subr.mxu0 0.0
        %623 = vmatpush1.msra.mxu0 %v586
        %624 = vmatprep.subr.mxu0 0.0
        %625 = vmatpush1.msra.mxu0 %v587
        %626 = vmatprep.subr.mxu0 0.0
        %627 = vmatpush1.msra.mxu0 %v588
        %628 = vmatprep.subr.mxu0 0.0
        %629 = vmatpush1.msra.mxu0 %v589
        %630 = vmatprep.subr.mxu0 0.0
        %631 = vmatpush1.msra.mxu0 0.0
        %632 = vmatprep.subr.mxu0 0.0
        %633 = vmatpush1.msra.mxu0 0.0
        %634 = vmatprep.subr.mxu0 0.0
        %635 = vmatpush1.msra.mxu0 0.0
        %636 = vmatprep.subr.mxu0 0.0
        %637 = vmatpush1.msra.mxu0 0.0
        %638 = vmatprep.subr.mxu0 0.0
        %639 = vmatpush1.msra.mxu0 0.0
        %640 = vmatprep.subr.mxu0 0.0
        %641 = vmatpush1.msra.mxu0 0.0
        %642 = vmatprep.subr.mxu0 0.0
        %643 = vmatpush1.msra.mxu0 0.0
        %644 = vmatprep.subr.mxu0 0.0
        %645 = vmatpush1.msra.mxu0 0.0
        %646 = vmatprep.subr.mxu0 0.0
        %647 = vmatpush1.msra.mxu0 0.0
        %648 = vmatprep.subr.mxu0 0.0
        %649 = vmatpush1.msra.mxu0 0.0
        %650 = vmatprep.subr.mxu0 0.0
        %651 = vmatpush1.msra.mxu0 0.0
        %652 = vmatprep.subr.mxu0 0.0
        %653 = vmatpush1.msra.mxu0 0.0
        %654 = vmatprep.subr.mxu0 0.0
        %655 = vmatpush1.msra.mxu0 0.0
        %656 = vmatprep.subr.mxu0 0.0
        %657 = vmatpush1.msra.mxu0 0.0
        %658 = vmatprep.subr.mxu0 0.0
        %659 = vmatpush1.msra.mxu0 0.0
        %660 = vmatprep.subr.mxu0 0.0
        %661 = vmatpush1.msra.mxu0 0.0
        %662 = vmatprep.mubr.f32.mxu0 0.0
        %663 = vmatmul.mubr.f32.gmra.mrb[0].mxu0 %v570
        %v664 = vpop.f32.mrb[0].mxu0
        %v665 = vadd.f32 %v596, %v664
        %v666 = vpop.f32.mrb[0].mxu0
        %667 = vdwg.mxu0
        %vm668 = vcmp.gt.f32.partialorder %v665, 0.0
        %v669 = vmul.f32 %v665, 0.2
        %v670 = vsel %vm668, %v665, %v669
        %s671 = scalar_lea.vmem [#allocation3], 640
        %v672 = vld [vmem:[%s671] sm:$0xff]
        %v673 = vld [vmem:[%s671 + $0x8] sm:$0xff]
        %v674 = vld [vmem:[%s671 + $0x10] sm:$0xff]
        %v675 = vld [vmem:[%s671 + $0x18] sm:$0xff]
        %v676 = vld [vmem:[%s671 + $0x20] sm:$0xff]
        %v677 = vld [vmem:[%s671 + $0x28] sm:$0xff]
        %v678 = vld [vmem:[%s671 + $0x30] sm:$0xff]
        %v679 = vld [vmem:[%s671 + $0x38] sm:$0xff]
        %v680 = vld [vmem:[%s671 + $0x40] sm:$0xff]
        %v681 = vld [vmem:[%s671 + $0x48] sm:$0xff]
        %v682 = vld [vmem:[%s671 + $0x50] sm:$0xff]
        %v683 = vld [vmem:[%s671 + $0x58] sm:$0xff]
        %v684 = vld [vmem:[%s671 + $0x60] sm:$0xff]
        %v685 = vld [vmem:[%s671 + $0x68] sm:$0xff]
        %v686 = vld [vmem:[%s671 + $0x70] sm:$0xff]
        %v687 = vld [vmem:[%s671 + $0x78] sm:$0xff]
        %s688 = scalar_lea.vmem %s2, 5
        %v689 = vld [vmem:[%s688] sm:$0x1]
        %v691 = vlaneseq
        %v692 = vshrl.u32 %v691, 7
        %v693 = vsub.s32 0, %v692
        %v694 = vrot.slane %v689, %v693
        %696 = vmatprep.subr.mxu0 0.0
        %697 = vmatpush1.msra.mxu0 %v672
        %698 = vmatprep.subr.mxu0 0.0
        %699 = vmatpush1.msra.mxu0 %v673
        %700 = vmatprep.subr.mxu0 0.0
        %701 = vmatpush1.msra.mxu0 %v674
        %702 = vmatprep.subr.mxu0 0.0
        %703 = vmatpush1.msra.mxu0 %v675
        %704 = vmatprep.subr.mxu0 0.0
        %705 = vmatpush1.msra.mxu0 %v676
        %706 = vmatprep.subr.mxu0 0.0
        %707 = vmatpush1.msra.mxu0 %v677
        %708 = vmatprep.subr.mxu0 0.0
        %709 = vmatpush1.msra.mxu0 %v678
        %710 = vmatprep.subr.mxu0 0.0
        %711 = vmatpush1.msra.mxu0 %v679
        %712 = vmatprep.subr.mxu0 0.0
        %713 = vmatpush1.msra.mxu0 %v680
        %714 = vmatprep.subr.mxu0 0.0
        %715 = vmatpush1.msra.mxu0 %v681
        %716 = vmatprep.subr.mxu0 0.0
        %717 = vmatpush1.msra.mxu0 %v682
        %718 = vmatprep.subr.mxu0 0.0
        %719 = vmatpush1.msra.mxu0 %v683
        %720 = vmatprep.subr.mxu0 0.0
        %721 = vmatpush1.msra.mxu0 %v684
        %722 = vmatprep.subr.mxu0 0.0
        %723 = vmatpush1.msra.mxu0 %v685
        %724 = vmatprep.subr.mxu0 0.0
        %725 = vmatpush1.msra.mxu0 %v686
        %726 = vmatprep.subr.mxu0 0.0
        %727 = vmatpush1.msra.mxu0 %v687
        %728 = vmatprep.subr.mxu0 0.0
        %729 = vmatpush1.msra.mxu0 0.0
        %730 = vmatprep.subr.mxu0 0.0
        %731 = vmatpush1.msra.mxu0 0.0
        %732 = vmatprep.subr.mxu0 0.0
        %733 = vmatpush1.msra.mxu0 0.0
        %734 = vmatprep.subr.mxu0 0.0
        %735 = vmatpush1.msra.mxu0 0.0
        %736 = vmatprep.subr.mxu0 0.0
        %737 = vmatpush1.msra.mxu0 0.0
        %738 = vmatprep.subr.mxu0 0.0
        %739 = vmatpush1.msra.mxu0 0.0
        %740 = vmatprep.subr.mxu0 0.0
        %741 = vmatpush1.msra.mxu0 0.0
        %742 = vmatprep.subr.mxu0 0.0
        %743 = vmatpush1.msra.mxu0 0.0
        %744 = vmatprep.subr.mxu0 0.0
        %745 = vmatpush1.msra.mxu0 0.0
        %746 = vmatprep.subr.mxu0 0.0
        %747 = vmatpush1.msra.mxu0 0.0
        %748 = vmatprep.subr.mxu0 0.0
        %749 = vmatpush1.msra.mxu0 0.0
        %750 = vmatprep.subr.mxu0 0.0
        %751 = vmatpush1.msra.mxu0 0.0
        %752 = vmatprep.subr.mxu0 0.0
        %753 = vmatpush1.msra.mxu0 0.0
        %754 = vmatprep.subr.mxu0 0.0
        %755 = vmatpush1.msra.mxu0 0.0
        %756 = vmatprep.subr.mxu0 0.0
        %757 = vmatpush1.msra.mxu0 0.0
        %758 = vmatprep.subr.mxu0 0.0
        %759 = vmatpush1.msra.mxu0 0.0
        %760 = vmatprep.mubr.f32.mxu0 0.0
        %761 = vmatmul.mubr.f32.gmra.mrb[0].mxu0 %v670
        %v762 = vpop.f32.mrb[0].mxu0
        %v763 = vadd.f32 %v694, %v762
        %v764 = vpop.f32.mrb[0].mxu0
        %765 = vdwg.mxu0
        %vm766 = vcmp.gt.f32.partialorder %v763, 0.0
        %v767 = vmul.f32 %v763, 0.2
        %v768 = vsel %vm766, %v763, %v767
        %s769 = scalar_lea.vmem [#allocation3], 768
        %v770 = vld [vmem:[%s769] sm:$0xff]
        %v771 = vld [vmem:[%s769 + $0x8] sm:$0xff]
        %v772 = vld [vmem:[%s769 + $0x10] sm:$0xff]
        %v773 = vld [vmem:[%s769 + $0x18] sm:$0xff]
        %v774 = vld [vmem:[%s769 + $0x20] sm:$0xff]
        %v775 = vld [vmem:[%s769 + $0x28] sm:$0xff]
        %v776 = vld [vmem:[%s769 + $0x30] sm:$0xff]
        %v777 = vld [vmem:[%s769 + $0x38] sm:$0xff]
        %v778 = vld [vmem:[%s769 + $0x40] sm:$0xff]
        %v779 = vld [vmem:[%s769 + $0x48] sm:$0xff]
        %v780 = vld [vmem:[%s769 + $0x50] sm:$0xff]
        %v781 = vld [vmem:[%s769 + $0x58] sm:$0xff]
        %v782 = vld [vmem:[%s769 + $0x60] sm:$0xff]
        %v783 = vld [vmem:[%s769 + $0x68] sm:$0xff]
        %v784 = vld [vmem:[%s769 + $0x70] sm:$0xff]
        %v785 = vld [vmem:[%s769 + $0x78] sm:$0xff]
        %s786 = scalar_lea.vmem %s2, 6
        %v787 = vld [vmem:[%s786] sm:$0x1]
        %v789 = vlaneseq
        %v790 = vshrl.u32 %v789, 7
        %v791 = vsub.s32 0, %v790
        %v792 = vrot.slane %v787, %v791
        %794 = vmatprep.subr.mxu0 0.0
        %795 = vmatpush1.msra.mxu0 %v770
        %796 = vmatprep.subr.mxu0 0.0
        %797 = vmatpush1.msra.mxu0 %v771
        %798 = vmatprep.subr.mxu0 0.0
        %799 = vmatpush1.msra.mxu0 %v772
        %800 = vmatprep.subr.mxu0 0.0
        %801 = vmatpush1.msra.mxu0 %v773
        %802 = vmatprep.subr.mxu0 0.0
        %803 = vmatpush1.msra.mxu0 %v774
        %804 = vmatprep.subr.mxu0 0.0
        %805 = vmatpush1.msra.mxu0 %v775
        %806 = vmatprep.subr.mxu0 0.0
        %807 = vmatpush1.msra.mxu0 %v776
        %808 = vmatprep.subr.mxu0 0.0
        %809 = vmatpush1.msra.mxu0 %v777
        %810 = vmatprep.subr.mxu0 0.0
        %811 = vmatpush1.msra.mxu0 %v778
        %812 = vmatprep.subr.mxu0 0.0
        %813 = vmatpush1.msra.mxu0 %v779
        %814 = vmatprep.subr.mxu0 0.0
        %815 = vmatpush1.msra.mxu0 %v780
        %816 = vmatprep.subr.mxu0 0.0
        %817 = vmatpush1.msra.mxu0 %v781
        %818 = vmatprep.subr.mxu0 0.0
        %819 = vmatpush1.msra.mxu0 %v782
        %820 = vmatprep.subr.mxu0 0.0
        %821 = vmatpush1.msra.mxu0 %v783
        %822 = vmatprep.subr.mxu0 0.0
        %823 = vmatpush1.msra.mxu0 %v784
        %824 = vmatprep.subr.mxu0 0.0
        %825 = vmatpush1.msra.mxu0 %v785
        %826 = vmatprep.subr.mxu0 0.0
        %827 = vmatpush1.msra.mxu0 0.0
        %828 = vmatprep.subr.mxu0 0.0
        %829 = vmatpush1.msra.mxu0 0.0
        %830 = vmatprep.subr.mxu0 0.0
        %831 = vmatpush1.msra.mxu0 0.0
        %832 = vmatprep.subr.mxu0 0.0
        %833 = vmatpush1.msra.mxu0 0.0
        %834 = vmatprep.subr.mxu0 0.0
        %835 = vmatpush1.msra.mxu0 0.0
        %836 = vmatprep.subr.mxu0 0.0
        %837 = vmatpush1.msra.mxu0 0.0
        %838 = vmatprep.subr.mxu0 0.0
        %839 = vmatpush1.msra.mxu0 0.0
        %840 = vmatprep.subr.mxu0 0.0
        %841 = vmatpush1.msra.mxu0 0.0
        %842 = vmatprep.subr.mxu0 0.0
        %843 = vmatpush1.msra.mxu0 0.0
        %844 = vmatprep.subr.mxu0 0.0
        %845 = vmatpush1.msra.mxu0 0.0
        %846 = vmatprep.subr.mxu0 0.0
        %847 = vmatpush1.msra.mxu0 0.0
        %848 = vmatprep.subr.mxu0 0.0
        %849 = vmatpush1.msra.mxu0 0.0
        %850 = vmatprep.subr.mxu0 0.0
        %851 = vmatpush1.msra.mxu0 0.0
        %852 = vmatprep.subr.mxu0 0.0
        %853 = vmatpush1.msra.mxu0 0.0
        %854 = vmatprep.subr.mxu0 0.0
        %855 = vmatpush1.msra.mxu0 0.0
        %856 = vmatprep.subr.mxu0 0.0
        %857 = vmatpush1.msra.mxu0 0.0
        %858 = vmatprep.mubr.f32.mxu0 0.0
        %859 = vmatmul.mubr.f32.gmra.mrb[0].mxu0 %v768
        %v860 = vpop.f32.mrb[0].mxu0
        %v861 = vadd.f32 %v792, %v860
        %v862 = vpop.f32.mrb[0].mxu0
        %863 = vdwg.mxu0
        %vm864 = vcmp.gt.f32.partialorder %v861, 0.0
        %v865 = vmul.f32 %v861, 0.2
        %v866 = vsel %vm864, %v861, %v865
        %s867 = scalar_lea.vmem [#allocation3], 896
        %v868 = vld [vmem:[%s867] sm:$0xff]
        %v869 = vld [vmem:[%s867 + $0x8] sm:$0xff]
        %v870 = vld [vmem:[%s867 + $0x10] sm:$0xff]
        %v871 = vld [vmem:[%s867 + $0x18] sm:$0xff]
        %v872 = vld [vmem:[%s867 + $0x20] sm:$0xff]
        %v873 = vld [vmem:[%s867 + $0x28] sm:$0xff]
        %v874 = vld [vmem:[%s867 + $0x30] sm:$0xff]
        %v875 = vld [vmem:[%s867 + $0x38] sm:$0xff]
        %v876 = vld [vmem:[%s867 + $0x40] sm:$0xff]
        %v877 = vld [vmem:[%s867 + $0x48] sm:$0xff]
        %v878 = vld [vmem:[%s867 + $0x50] sm:$0xff]
        %v879 = vld [vmem:[%s867 + $0x58] sm:$0xff]
        %v880 = vld [vmem:[%s867 + $0x60] sm:$0xff]
        %v881 = vld [vmem:[%s867 + $0x68] sm:$0xff]
        %v882 = vld [vmem:[%s867 + $0x70] sm:$0xff]
        %v883 = vld [vmem:[%s867 + $0x78] sm:$0xff]
        %s884 = scalar_lea.vmem %s2, 7
        %v885 = vld [vmem:[%s884] sm:$0x1]
        %v887 = vlaneseq
        %v888 = vshrl.u32 %v887, 7
        %v889 = vsub.s32 0, %v888
        %v890 = vrot.slane %v885, %v889
        %892 = vmatprep.subr.mxu0 0.0
        %893 = vmatpush1.msra.mxu0 %v868
        %894 = vmatprep.subr.mxu0 0.0
        %895 = vmatpush1.msra.mxu0 %v869
        %896 = vmatprep.subr.mxu0 0.0
        %897 = vmatpush1.msra.mxu0 %v870
        %898 = vmatprep.subr.mxu0 0.0
        %899 = vmatpush1.msra.mxu0 %v871
        %900 = vmatprep.subr.mxu0 0.0
        %901 = vmatpush1.msra.mxu0 %v872
        %902 = vmatprep.subr.mxu0 0.0
        %903 = vmatpush1.msra.mxu0 %v873
        %904 = vmatprep.subr.mxu0 0.0
        %905 = vmatpush1.msra.mxu0 %v874
        %906 = vmatprep.subr.mxu0 0.0
        %907 = vmatpush1.msra.mxu0 %v875
        %908 = vmatprep.subr.mxu0 0.0
        %909 = vmatpush1.msra.mxu0 %v876
        %910 = vmatprep.subr.mxu0 0.0
        %911 = vmatpush1.msra.mxu0 %v877
        %912 = vmatprep.subr.mxu0 0.0
        %913 = vmatpush1.msra.mxu0 %v878
        %914 = vmatprep.subr.mxu0 0.0
        %915 = vmatpush1.msra.mxu0 %v879
        %916 = vmatprep.subr.mxu0 0.0
        %917 = vmatpush1.msra.mxu0 %v880
        %918 = vmatprep.subr.mxu0 0.0
        %919 = vmatpush1.msra.mxu0 %v881
        %920 = vmatprep.subr.mxu0 0.0
        %921 = vmatpush1.msra.mxu0 %v882
        %922 = vmatprep.subr.mxu0 0.0
        %923 = vmatpush1.msra.mxu0 %v883
        %924 = vmatprep.subr.mxu0 0.0
        %925 = vmatpush1.msra.mxu0 0.0
        %926 = vmatprep.subr.mxu0 0.0
        %927 = vmatpush1.msra.mxu0 0.0
        %928 = vmatprep.subr.mxu0 0.0
        %929 = vmatpush1.msra.mxu0 0.0
        %930 = vmatprep.subr.mxu0 0.0
        %931 = vmatpush1.msra.mxu0 0.0
        %932 = vmatprep.subr.mxu0 0.0
        %933 = vmatpush1.msra.mxu0 0.0
        %934 = vmatprep.subr.mxu0 0.0
        %935 = vmatpush1.msra.mxu0 0.0
        %936 = vmatprep.subr.mxu0 0.0
        %937 = vmatpush1.msra.mxu0 0.0
        %938 = vmatprep.subr.mxu0 0.0
        %939 = vmatpush1.msra.mxu0 0.0
        %940 = vmatprep.subr.mxu0 0.0
        %941 = vmatpush1.msra.mxu0 0.0
        %942 = vmatprep.subr.mxu0 0.0
        %943 = vmatpush1.msra.mxu0 0.0
        %944 = vmatprep.subr.mxu0 0.0
        %945 = vmatpush1.msra.mxu0 0.0
        %946 = vmatprep.subr.mxu0 0.0
        %947 = vmatpush1.msra.mxu0 0.0
        %948 = vmatprep.subr.mxu0 0.0
        %949 = vmatpush1.msra.mxu0 0.0
        %950 = vmatprep.subr.mxu0 0.0
        %951 = vmatpush1.msra.mxu0 0.0
        %952 = vmatprep.subr.mxu0 0.0
        %953 = vmatpush1.msra.mxu0 0.0
        %954 = vmatprep.subr.mxu0 0.0
        %955 = vmatpush1.msra.mxu0 0.0
        %956 = vmatprep.mubr.f32.mxu0 0.0
        %957 = vmatmul.mubr.f32.gmra.mrb[0].mxu0 %v866
        %v958 = vpop.f32.mrb[0].mxu0
        %v959 = vadd.f32 %v890, %v958
        %v960 = vpop.f32.mrb[0].mxu0
        %961 = vdwg.mxu0
        %v962 = vadd.f32 %v570, %v959
        %963 = vst [vmem:[%s176] sm:$0xff] %v962
        %s964 = sand.u32 %s94, 1
        %s965 = scalar_lea.sflag [#allocation5], %s964
        %s966 = sand.u32 %s94, 1
        %s967 = smul.addr %s966, 8
        %s968 = scalar_lea.vmem [#allocation6], %s967
        // Predicated region
        $region37: #{tpu_custom_call.1} parent=31 // pred_check
          %p969 = pneg %p104
        $region38: #{tpu_custom_call.1} parent=31 // pred_check_branch
          %971 = sbr.rel (%p969) target = $region40
        $region39: #{tpu_custom_call.1} parent=31 // pred_region
          %s973 = ssub.s32 128, 128
          %974 = vsyncadd %s965, %s973
          %s975 = smul.addr %s18, 128
          %s976 = scalar_lea.hbm %s3, %s975
          %s978 = sshll.u32 %s968, 4
          %s979 = int_to_ptr.vmem [resolvable:$true] %s978
          %981 = dma.vmem_to_hbm [thread:$0]  %s979, 128, %s976, %s965
        $region40: #{tpu_custom_call.1} parent=31 // pred_fallthru
          _
      $region32: #{tpu_custom_call.1} parent=5 // pred_fallthru
        _
      %p982 = scmp.le.s32.totalorder 2, %s13
      // Predicated region
      $region41: #{tpu_custom_call.1} parent=5 // pred_check
        %p983 = pneg %p982
      $region42: #{tpu_custom_call.1} parent=5 // pred_check_branch
        %985 = sbr.rel (%p983) target = $region44
      $region43: #{tpu_custom_call.1} parent=5 // pred_region
        %s986 = ssub.s32 %s13, 2
        // Predicated region
        $region45: #{tpu_custom_call.1} parent=43 // pred_check
          %p987 = pneg %p110
        $region46: #{tpu_custom_call.1} parent=43 // pred_check_branch
          %989 = sbr.rel (%p987) target = $region48
        $region47: #{tpu_custom_call.1} parent=43 // pred_region
          %s990 = sand.u32 %s95, 1
          %s991 = scalar_lea.sflag [#allocation5], %s990
          %s992 = sand.u32 %s95, 1
          %s993 = smul.addr %s992, 8
          %s994 = scalar_lea.vmem [#allocation6], %s993
          %995 = dma.done %s991, 128
        $region48: #{tpu_custom_call.1} parent=43 // pred_fallthru
          _
      $region44: #{tpu_custom_call.1} parent=5 // pred_fallthru
        _
    $region6: #{tpu_custom_call.1} parent=1 // loop_footer
      %s17 = sadd.s32 1, %s13
    $region7: #{tpu_custom_call.1} parent=1 // loop_footer_branch
      %12 = sbr.rel target = $region3
    $region8: #{tpu_custom_call.1} parent=1 // loop_exit
      _
    %996 = vsyncpa [#allocation4], 1
    %s997 = scalar_lea.sflag [#allocation4], 1
    %998 = vsyncpa %s997, 1
    %999 = vsyncpa [#allocation5], 1
    %s1000 = scalar_lea.sflag [#allocation5], 1
    %1001 = vsyncpa %s1000, 1

</llo_original>
